<compile_context>
chip_gen: v5e
topology: v5e:2x2
jax: 0.10.0
libtpu: 0.0.40
codegen_flags: <defaults>
</compile_context>

<pallas_src>
import functools

import jax
import jax.numpy as jnp
from jax.experimental import pallas as pl
from jax.experimental.pallas import tpu as pltpu


def _round_up(x, m):
    return ((x + m - 1) // m) * m


def _vmem_caps():
    """(vmem_limit_bytes, tile_budget_bytes) with generous headroom per chip."""
    cap = 64 * 1024 * 1024  # conservative fallback (v7x per-TC VMEM)
    try:
        cap = int(pltpu.get_tpu_info().vmem_capacity_bytes)
    except Exception:
        pass
    vmem_limit = max(32 * 1024 * 1024, min(int(cap * 0.6), 96 * 1024 * 1024))
    tile_budget = vmem_limit // 3  # double-buffered native input + f32 temporaries
    return vmem_limit, tile_budget


def _choose_tile_rows(n, c, itemsize, budget):
    # Per-row estimate: double-buffered native-dtype input tile + ~2 f32 temps.
    per_row = c * (2 * itemsize + 8) + 32
    tn = (budget // per_row) // 8 * 8
    tn = max(8, min(1024, tn))
    # Keep several grid tiles so the "parallel" batch axis shards across both
    # TensorCores on v7x (harmless on single-TC v5e/v6e).
    target = _round_up(max(1, -(-n // 4)), 8)
    tn = min(tn, max(8, target))
    if tn >= n:
        tn = n  # single tile covering the full (possibly unaligned) batch
    return int(tn)


def _ce_ls_tile_kernel(logits_ref, tgt_logit_ref, out_ref, *,
                       num_classes, num_rows, tile_rows, epsilon, rows_padded):
    # logits_ref    : (TN, C) native dtype in VMEM (full class axis, no padding)
    # tgt_logit_ref : (TN, 1) f32 in VMEM -- pre-gathered x[i, t_i]
    # out_ref       : (1, 1, 128) f32 in VMEM -- per-tile partial loss (broadcast)
    x = logits_ref[...].astype(jnp.float32)                          # (TN, C)
    tn = x.shape[0]

    x_max = jnp.max(x, axis=1, keepdims=True)                        # (TN, 1)
    sum_x = jnp.sum(x, axis=1, keepdims=True)                        # (TN, 1)
    lse = jnp.log(jnp.sum(jnp.exp(x - x_max), axis=1, keepdims=True))  # (TN, 1)

    c = float(num_classes)
    tgt_shifted = tgt_logit_ref[...] - x_max                         # x[i,t_i] - x_max
    sum_shifted = sum_x - c * x_max                                  # sum_j (x_ij - x_max)

    row_loss = ((1.0 - epsilon) * (lse - tgt_shifted)
                + (epsilon / c) * (c * lse - sum_shifted))            # (TN, 1)

    if rows_padded:
        i = pl.program_id(0)
        row_ids = jax.lax.broadcasted_iota(jnp.int32, (tn, 1), 0) + i * tile_rows
        row_loss = jnp.where(row_ids < num_rows, row_loss, 0.0)

    tile_sum = jnp.sum(row_loss)                                     # scalar partial
    out_ref[...] = jnp.broadcast_to(tile_sum, (1, 1, 128)).astype(jnp.float32)


def cross_entropy_label_smooth(inputs, targets, num_classes, epsilon, tile_rows=None):
    """inputs: (N, C) float logits (any float dtype); targets: (N,) int class ids."""
    n, c = inputs.shape
    assert c == num_classes
    itemsize = jnp.dtype(inputs.dtype).itemsize

    vmem_limit, tile_budget = _vmem_caps()
    if tile_rows is None:
        tile_rows = _choose_tile_rows(n, c, itemsize, tile_budget)
    num_tiles = int(pl.cdiv(n, tile_rows))
    rows_padded = (n % tile_rows) != 0

    # Hoist the target-logit gather out of the kernel (touches only N elements).
    tgt_logit = jnp.take_along_axis(
        inputs, targets.astype(jnp.int32).reshape(n, 1), axis=1
    ).astype(jnp.float32)                                            # (N, 1)

    kernel = functools.partial(
        _ce_ls_tile_kernel,
        num_classes=c,
        num_rows=n,
        tile_rows=tile_rows,
        epsilon=float(epsilon),
        rows_padded=rows_padded,
    )

    partials = pl.pallas_call(
        kernel,
        out_shape=jax.ShapeDtypeStruct((num_tiles, 1, 128), jnp.float32),
        grid=(num_tiles,),
        in_specs=[
            pl.BlockSpec((tile_rows, c), lambda i: (i, 0)),   # full-C logits tile, native dtype
            pl.BlockSpec((tile_rows, 1), lambda i: (i, 0)),   # pre-gathered target logits
        ],
        out_specs=pl.BlockSpec((1, 1, 128), lambda i: (i, 0, 0)),
        compiler_params=pltpu.CompilerParams(
            dimension_semantics=("parallel",),
            vmem_limit_bytes=vmem_limit,
        ),
        cost_estimate=pl.CostEstimate(
            flops=4 * n * c,
            transcendentals=n * c,
            bytes_accessed=n * c * itemsize + n * 8 + num_tiles * 128 * 4,
        ),
    )(inputs, tgt_logit)

    return jnp.sum(partials[:, 0, 0]) / jnp.float32(n)


def _reference(inputs, targets, num_classes, epsilon):
    log_probs = jax.nn.log_softmax(inputs.astype(jnp.float32), axis=1)
    onehot = jax.nn.one_hot(targets, num_classes, dtype=jnp.float32)
    t = (1.0 - epsilon) * onehot + epsilon / num_classes
    return jnp.sum(jnp.mean(-t * log_probs, axis=0))


if __name__ == "__main__":
    key = jax.random.PRNGKey(0)
    k1, k2, k3, k4, k5, k6 = jax.random.split(key, 6)
    epsilon = 0.1

    # Case 1: small, aligned shapes (batch=8, classes=32) -> single full tile.
    num_classes, batch = 32, 8
    logits = jax.random.normal(k1, (batch, num_classes), dtype=jnp.float32)
    targets = jax.random.randint(k2, (batch,), 0, num_classes, dtype=jnp.int32)
    loss = jax.block_until_ready(
        cross_entropy_label_smooth(logits, targets, num_classes, epsilon))
    ref = _reference(logits, targets, num_classes, epsilon)
    assert jnp.allclose(loss, ref, rtol=1e-5, atol=1e-5), (loss, ref)

    # Case 2: un-aligned shapes (C=200 not %128, N=12 not %tile) -> ragged last tile.
    num_classes2, batch2 = 200, 12
    logits2 = jax.random.normal(k3, (batch2, num_classes2), dtype=jnp.float32)
    targets2 = jax.random.randint(k4, (batch2,), 0, num_classes2, dtype=jnp.int32)
    loss2 = jax.block_until_ready(
        cross_entropy_label_smooth(logits2, targets2, num_classes2, epsilon))
    ref2 = _reference(logits2, targets2, num_classes2, epsilon)
    assert jnp.allclose(loss2, ref2, rtol=1e-5, atol=1e-5), (loss2, ref2)

    # Case 3: bf16 logits streamed in native dtype, upcast in-kernel.
    num_classes3, batch3 = 1000, 16
    logits3 = jax.random.normal(k5, (batch3, num_classes3), dtype=jnp.bfloat16)
    targets3 = jax.random.randint(k6, (batch3,), 0, num_classes3, dtype=jnp.int32)
    loss3 = jax.block_until_ready(
        cross_entropy_label_smooth(logits3, targets3, num_classes3, epsilon))
    ref3 = _reference(logits3, targets3, num_classes3, epsilon)
    assert jnp.allclose(loss3, ref3, rtol=1e-4, atol=1e-4), (loss3, ref3)

    print("KERNEL_OK")
</pallas_src>

<mosaic_0001>
module attributes {stable_mosaic.version = 11 : i64} {
  func.func @_ce_ls_tile_kernel(%arg0: i32, %arg1: memref<8x32xf32, #tpu.memory_space<vmem>>, %arg2: memref<8x1xf32, #tpu.memory_space<vmem>>, %arg3: memref<1x1x128xf32, #tpu.memory_space<vmem>>) attributes {dimension_semantics = [#tpu.dimension_semantics<parallel>], iteration_bounds = array<i64: 1>, scalar_prefetch = 0 : i64, scratch_operands = 0 : i64, tpu.core_type = #tpu.core_type<tc>, window_params = [{transform_indices = @transform_0, window_bounds = array<i64: 8, 32>}, {transform_indices = @transform_1, window_bounds = array<i64: 8, 1>}, {transform_indices = @transform_2, window_bounds = array<i64: 1, 1, 128>}]} {
    %c0 = arith.constant 0 : index
    %c0_0 = arith.constant 0 : index
    %0 = vector.load %arg1[%c0, %c0_0] : memref<8x32xf32, #tpu.memory_space<vmem>>, vector<8x32xf32>
    %cst = arith.constant dense<0xFF800000> : vector<8xf32>
    %1 = vector.multi_reduction <maximumf>, %0, %cst [1] : vector<8x32xf32> to vector<8xf32>
    %2 = vector.shape_cast %1 : vector<8xf32> to vector<8x1xf32>
    %cst_1 = arith.constant dense<0.000000e+00> : vector<8xf32>
    %3 = vector.multi_reduction <add>, %0, %cst_1 [1] : vector<8x32xf32> to vector<8xf32>
    %4 = vector.shape_cast %3 : vector<8xf32> to vector<8x1xf32>
    %5 = vector.broadcast %2 : vector<8x1xf32> to vector<8x32xf32>
    %6 = arith.subf %0, %5 : vector<8x32xf32>
    %7 = math.exp %6 : vector<8x32xf32>
    %cst_2 = arith.constant dense<0.000000e+00> : vector<8xf32>
    %8 = vector.multi_reduction <add>, %7, %cst_2 [1] : vector<8x32xf32> to vector<8xf32>
    %9 = vector.shape_cast %8 : vector<8xf32> to vector<8x1xf32>
    %10 = math.log %9 : vector<8x1xf32>
    %c0_3 = arith.constant 0 : index
    %c0_4 = arith.constant 0 : index
    %11 = vector.load %arg2[%c0_3, %c0_4] : memref<8x1xf32, #tpu.memory_space<vmem>>, vector<8x1xf32>
    %12 = arith.subf %11, %2 : vector<8x1xf32>
    %cst_5 = arith.constant 3.200000e+01 : f32
    %13 = vector.broadcast %cst_5 : f32 to vector<8x1xf32>
    %14 = arith.mulf %13, %2 : vector<8x1xf32>
    %15 = arith.subf %4, %14 : vector<8x1xf32>
    %16 = arith.subf %10, %12 : vector<8x1xf32>
    %cst_6 = arith.constant 0.899999976 : f32
    %17 = vector.broadcast %cst_6 : f32 to vector<8x1xf32>
    %18 = arith.mulf %17, %16 : vector<8x1xf32>
    %cst_7 = arith.constant 3.200000e+01 : f32
    %19 = vector.broadcast %cst_7 : f32 to vector<8x1xf32>
    %20 = arith.mulf %19, %10 : vector<8x1xf32>
    %21 = arith.subf %20, %15 : vector<8x1xf32>
    %cst_8 = arith.constant 3.125000e-03 : f32
    %22 = vector.broadcast %cst_8 : f32 to vector<8x1xf32>
    %23 = arith.mulf %22, %21 : vector<8x1xf32>
    %24 = arith.addf %18, %23 : vector<8x1xf32>
    %25 = vector.shape_cast %24 : vector<8x1xf32> to vector<1x8x1xf32>
    %cst_9 = arith.constant dense<0.000000e+00> : vector<1xf32>
    %26 = vector.multi_reduction <add>, %25, %cst_9 [1, 2] : vector<1x8x1xf32> to vector<1xf32>
    %27 = vector.shape_cast %26 : vector<1xf32> to vector<1x1x1xf32>
    %28 = vector.extract %27[0, 0, 0] : f32 from vector<1x1x1xf32>
    %29 = vector.broadcast %28 : f32 to vector<1x1x128xf32>
    %c0_10 = arith.constant 0 : index
    %c0_11 = arith.constant 0 : index
    %c0_12 = arith.constant 0 : index
    %30 = vector.load %arg3[%c0_10, %c0_11, %c0_12] : memref<1x1x128xf32, #tpu.memory_space<vmem>>, vector<1x1x128xf32>
    tpu.vector_store %arg3[%c0_10, %c0_11, %c0_12], %29 {strides = array<i32>} : memref<1x1x128xf32, #tpu.memory_space<vmem>>, vector<1x1x128xf32>,
    return
  }
  func.func @transform_0(%arg0: i32) -> (i32, i32) {
    %c0_i32 = arith.constant 0 : i32
    %c0_i32_0 = arith.constant 0 : i32
    return %arg0, %c0_i32 : i32, i32
  }
  func.func @transform_1(%arg0: i32) -> (i32, i32) {
    %c0_i32 = arith.constant 0 : i32
    %c0_i32_0 = arith.constant 0 : i32
    return %arg0, %c0_i32 : i32, i32
  }
  func.func @transform_2(%arg0: i32) -> (i32, i32, i32) {
    %c0_i32 = arith.constant 0 : i32
    %c0_i32_0 = arith.constant 0 : i32
    %c0_i32_1 = arith.constant 0 : i32
    return %arg0, %c0_i32, %c0_i32_0 : i32, i32, i32
  }
}

</mosaic_0001>

<llo_original>
// kernel: tpu_custom_call.1
$region0: #{tpu_custom_call.1}
  #allocation0 [shape = 'u32[]', space=smem, size = 0x4, offset = 0x4, fixed_abs, tag = 'smem constant byte address 0x4 - core index']
  #allocation1 [shape = 'u32[72,128]{1,0:T(1,128)}', space=vmem, size = 0x9000, scoped, tag = 'internal scratch']
  %s0 = inlined_call_operand.vmem [shape: f32[8,32], index: 0, kind: input, shape index: {}]
  %s1 = inlined_call_operand.vmem [shape: f32[8,1], index: 1, kind: input, shape index: {}]
  %s2 = inlined_call_operand.hbm [shape: f32[1,1,128], index: 2, kind: output, shape index: {}]
  %s3 = sld [smem:[#allocation0]]
  $region18: #{tpu_custom_call.1} parent=0
    _
  %s5 = ssub.s32 1, %s3
  %s6 = scalar_select 0, %s5, %s3
  $region1: #{tpu_custom_call.1} parent=0
    #allocation2 [shape = 'u8[512]{0}', space=vmem, size = 0x400, scoped, tag = 'output window, operand 0, single buffered']
    #allocation3 [shape = 's32[1]{0}', space=sflag, size = 0x4, scoped, tag = 'scoped memory for tpu_custom_call.1']
    %7 = vsyncpa [#allocation3], 0
    // Predicated region
    $region2: #{tpu_custom_call.1} parent=1 // pred_check
      _
    $region3: #{tpu_custom_call.1} parent=1 // pred_check_branch
      %9 = sbr.rel (0) target = $region5
    $region4: #{tpu_custom_call.1} parent=1 // pred_region
      _
    $region5: #{tpu_custom_call.1} parent=1 // pred_fallthru
      _
    // Predicated region
    $region6: #{tpu_custom_call.1} parent=1 // pred_check
      _
    $region7: #{tpu_custom_call.1} parent=1 // pred_check_branch
      %11 = sbr.rel (0) target = $region9
    $region8: #{tpu_custom_call.1} parent=1 // pred_region
      _
    $region9: #{tpu_custom_call.1} parent=1 // pred_fallthru
      _
    %v12 = vld [vmem:[%s0] sm:$0xff]
    %vm13 = vcmask 261120
    %v14 = vsel %vm13, %v12, -inf
    %15 = vmax.xlane.f32.xlu0 %v14
    %v16 = vpop.xlane.xlu0 %15
    %v17 = vsel %vm13, %v12, 0.0
    %18 = vadd.xlane.f32.xlu0 %v17
    %v19 = vpop.xlane.xlu0 %18
    %v20 = vsub.f32 %v12, %v16
    %v21 = vmul.f32 %v20, 1.442695
    %v22 = vpow.pop %v21
    %v23 = vsel %vm13, %v22, 0.0
    %24 = vadd.xlane.f32.xlu0 %v23
    %v25 = vpop.xlane.xlu0 %24
    %v26 = vlog2.pop %v25
    %v27 = vmul.f32 %v26, 0.6931472
    %v28 = vld [vmem:[%s1] sm:$0xff]
    %v29 = vsub.f32 %v28, %v16
    %v30 = vmul.f32 %v16, 32.0
    %v31 = vsub.f32 %v19, %v30
    %v32 = vsub.f32 %v27, %v29
    %v33 = vmul.f32 %v32, 0.9
    %v34 = vmul.f32 %v27, 32.0
    %v35 = vsub.f32 %v34, %v31
    %v36 = vmul.f32 %v35, 0.003125
    %v37 = vadd.f32 %v33, %v36
    %vm38 = vcmask 7168
    %v39 = vsel %vm38, %v37, 0.0
    %40 = vadd.xlane.f32.xlu0 %v39
    %v41 = vpop.xlane.xlu0 %40
    %v42 = vrot.slane %v41, 4
    %v43 = vadd.f32 %v41, %v42
    %v44 = vrot.slane %v43, 2
    %v45 = vadd.f32 %v43, %v44
    %v46 = vrot.slane %v45, 1
    %v47 = vadd.f32 %v45, %v46
    %s48 = vtos %v47
    %v49 = vstv %s48
    %50 = vst [vmem:[#allocation2] sm:$0x1] %v49
    // Predicated region
    $region10: #{tpu_custom_call.1} parent=1 // pred_check
      _
    $region11: #{tpu_custom_call.1} parent=1 // pred_check_branch
      %52 = sbr.rel (0) target = $region13
    $region12: #{tpu_custom_call.1} parent=1 // pred_region
      %54 = vsyncadd [#allocation3], 0
      %s56 = sshll.u32 [#allocation2], 4
      %s57 = int_to_ptr.vmem [resolvable:$true] %s56
      %s58 = sshll.u32 %s2, 4
      %s59 = int_to_ptr.hbm [resolvable:$true] %s58
      %61 = dma.vmem_to_hbm [thread:$0]  %s57, 16, %s59, [#allocation3]
    $region13: #{tpu_custom_call.1} parent=1 // pred_fallthru
      _
    // Predicated region
    $region14: #{tpu_custom_call.1} parent=1 // pred_check
      _
    $region15: #{tpu_custom_call.1} parent=1 // pred_check_branch
      %63 = sbr.rel (0) target = $region17
    $region16: #{tpu_custom_call.1} parent=1 // pred_region
      %65 = dma.done [#allocation3], 16
    $region17: #{tpu_custom_call.1} parent=1 // pred_fallthru
      _
    %66 = vsyncpa [#allocation3], 1

</llo_original>
